<compile_context>
chip_gen: v6e
topology: v6e:2x2x1
jax: 0.10.0
libtpu: 0.0.40
codegen_flags: <defaults>
</compile_context>

<pallas_src>
import functools

import jax
import jax.numpy as jnp
from jax import lax
from jax.experimental import pallas as pl
from jax.experimental.pallas import tpu as pltpu

LN_EPS = 1e-5                       # nn.LayerNorm default
_INV_SQRT2 = 0.7071067811865476
_GELU_TANH_C = 0.7978845608028654   # sqrt(2/pi)


def _round_up(x, m):
    return (x + m - 1) // m * m


def _vmem_capacity_bytes():
    """Physical VMEM of the local TPU; conservative 64 MiB fallback."""
    try:
        info = pltpu.get_tpu_info()
        cap = getattr(info, "vmem_capacity_bytes", None)
        if cap:
            return int(cap)
    except Exception:
        pass
    return 64 * 2 ** 20


def _ff_kernel(x_ref, gamma_ref, beta_ref, w1_ref, b1_ref, w2_ref, b2_ref,
               o_ref, xn_ref, acc_ref, *, inv_dim, real_d, mask_lanes,
               approx_gelu):
    """One (rows, Dp) tile x one H tile of: LN -> Linear -> GELU -> Linear -> +x."""
    h_idx = pl.program_id(2)

    @pl.when(h_idx == 0)
    def _():
        # LayerNorm once per row tile; cached (already in the weight dtype) in
        # xn_ref and reused by every H tile of both matmuls.
        x = x_ref[...].astype(jnp.float32)
        mean = jnp.sum(x, axis=-1, keepdims=True) * inv_dim
        diff = x - mean
        if mask_lanes:
            # Padded lanes would otherwise hold -mean; zero them so the
            # centered variance only sees the real D lanes.
            lane = lax.broadcasted_iota(jnp.int32, diff.shape, 1)
            diff = jnp.where(lane < real_d, diff, 0.0)
        var = jnp.sum(diff * diff, axis=-1, keepdims=True) * inv_dim
        xn = diff * lax.rsqrt(var + LN_EPS)
        # gamma/beta are zero-padded -> padded lanes stay exactly 0.
        xn = xn * gamma_ref[...].astype(jnp.float32) + beta_ref[...].astype(jnp.float32)
        xn_ref[...] = xn.astype(xn_ref.dtype)
        acc_ref[...] = jnp.zeros_like(acc_ref)

    # Linear 1 on the MXU: weight-dtype operands (bf16 in production), f32 acc.
    h = jnp.dot(xn_ref[...], w1_ref[...], preferred_element_type=jnp.float32)
    h = h + b1_ref[...].astype(jnp.float32)

    if approx_gelu:
        # tanh form: the transcendental goes to the EUP slot instead of a long
        # erf polynomial on the VALU (keeps the MXU the binding unit).
        h = 0.5 * h * (1.0 + jnp.tanh(_GELU_TANH_C * (h + 0.044715 * h * h * h)))
    else:
        # Exact erf form, matching torch.nn.GELU() default.
        h = 0.5 * h * (1.0 + lax.erf(h * _INV_SQRT2))

    # Linear 2: accumulate the partial product over H tiles in f32 scratch.
    acc_ref[...] += jnp.dot(h.astype(w2_ref.dtype), w2_ref[...],
                            preferred_element_type=jnp.float32)

    @pl.when(h_idx == pl.num_programs(2) - 1)
    def _():
        y = acc_ref[...] + b2_ref[...].astype(jnp.float32)
        o_ref[...] = (y + x_ref[...].astype(jnp.float32)).astype(o_ref.dtype)


def _ff_fused(xs, gamma, beta, w1, b1, w2, b2, real_d, *,
              block_rows=None, block_h=None, approx_gelu=False):
    """xs: (2, N, D) stacked branches -> (2, N, D) branch outputs (+ residual)."""
    nb, N, D = xs.shape
    Dp, Hp = w1.shape[-2], w1.shape[-1]          # pre-padded (multiples of 128)

    vmem_cap = _vmem_capacity_bytes()
    budget = int(vmem_cap * 0.75)                # headroom for Mosaic scratch

    x_item = xs.dtype.itemsize
    w_item = w1.dtype.itemsize

    if block_rows is None:
        # 128-MiB parts (v5e/v6e) can afford 1024-row tiles; 64-MiB (v7x) -> 512.
        cap_rows = 1024 if vmem_cap >= 100 * 2 ** 20 else 512
        block_rows = min(cap_rows, _round_up(N, 16))
    Np = _round_up(N, block_rows)

    def est(bh, w_buf):
        weights = w_buf * 2 * Dp * bh * w_item              # w1 + w2 tiles
        vectors = (3 * Dp + 2 * bh) * w_item                # gamma, beta, b1, b2
        rows = 4 * block_rows * Dp * x_item                 # x + out, double-buf
        scratch = block_rows * Dp * (4 + w_item)            # acc + xn
        interm = block_rows * bh * 4 + 2 * block_rows * Dp * 4
        return weights + vectors + rows + scratch + interm

    if block_h is None:
        if est(Hp, 2) <= budget:
            block_h, w_buf = Hp, 2          # resident weights, DMA fully hidden
        elif est(Hp, 1) <= budget:
            block_h, w_buf = Hp, 1          # resident weights, small boundary stall
        else:
            # H-tiled path (large D*H on 64-MiB v7x): stream weight tiles,
            # double-buffered, accumulate the second matmul in f32 scratch.
            block_h, w_buf = 128, 2
            for k in range(Hp // 128, 0, -1):
                if (Hp // 128) % k == 0 and est(k * 128, 2) <= budget:
                    block_h = k * 128
                    break
    else:
        assert Hp % block_h == 0, "block_h must divide the padded hidden dim"
        w_buf = 2 if est(block_h, 2) <= budget else 1
    n_h = Hp // block_h

    vmem_limit = int(min(budget, max(16 * 2 ** 20, 1.4 * est(block_h, w_buf))))

    # Zero-pad activations only (weights are pre-padded in pack_*).
    if (Np, Dp) != (N, D):
        xs = jnp.pad(xs, ((0, 0), (0, Np - N), (0, Dp - D)))

    row_spec = pl.BlockSpec((pl.Squeezed(), block_rows, Dp),
                            lambda b, i, h: (b, i, 0))
    w_mode = {} if w_buf == 2 else dict(pipeline_mode=pl.Buffered(1))

    def small_spec(cols):
        # gamma/beta/b2: block changes only at the branch boundary and is tiny.
        return pl.BlockSpec((pl.Squeezed(), 1, cols), lambda b, i, h: (b, 0, 0),
                            pipeline_mode=pl.Buffered(1))

    in_specs = [
        row_spec,                                                          # x
        small_spec(Dp),                                                    # gamma
        small_spec(Dp),                                                    # beta
        pl.BlockSpec((pl.Squeezed(), Dp, block_h),
                     lambda b, i, h: (b, 0, h), **w_mode),                 # w1
        pl.BlockSpec((pl.Squeezed(), 1, block_h),
                     lambda b, i, h: (b, 0, h), **w_mode),                 # b1
        pl.BlockSpec((pl.Squeezed(), block_h, Dp),
                     lambda b, i, h: (b, h, 0), **w_mode),                 # w2
        small_spec(Dp),                                                    # b2
    ]

    cost = pl.CostEstimate(
        flops=4 * nb * Np * Dp * Hp,                    # two matmuls per branch
        transcendentals=nb * Np * Hp,                   # erf / tanh
        bytes_accessed=2 * nb * Np * Dp * x_item + 2 * nb * Dp * Hp * w_item,
    )

    out = pl.pallas_call(
        functools.partial(_ff_kernel, inv_dim=1.0 / real_d, real_d=real_d,
                          mask_lanes=(Dp != real_d), approx_gelu=approx_gelu),
        out_shape=jax.ShapeDtypeStruct((nb, Np, Dp), xs.dtype),
        grid_spec=pltpu.PrefetchScalarGridSpec(
            num_scalar_prefetch=0,
            grid=(nb, Np // block_rows, n_h),
            in_specs=in_specs,
            out_specs=row_spec,
            scratch_shapes=[pltpu.VMEM((block_rows, Dp), w1.dtype),     # xn
                            pltpu.VMEM((block_rows, Dp), jnp.float32)],  # acc
        ),
        compiler_params=pltpu.CompilerParams(
            # TODO(synk): on v7x, verify with xprof that the leading branch axis
            # is sharded across the 2 TensorCores; if not, switch it to
            # pltpu.CORE_PARALLEL (unsafe on single-TC v5e/v6e).
            dimension_semantics=("parallel", "parallel", "arbitrary"),
            vmem_limit_bytes=vmem_limit),
        cost_estimate=cost,
    )(xs, gamma, beta, w1, b1, w2, b2)

    if (Np, Dp) != (N, D):
        out = out[:, :N, :D]
    return out


def init_branch_params(key, dim, hidden_dim, dtype=jnp.float32):
    k1, k2 = jax.random.split(key)
    return dict(
        gamma=jnp.ones((1, dim), dtype),
        beta=jnp.zeros((1, dim), dtype),
        w1=(jax.random.normal(k1, (dim, hidden_dim)) * 0.02).astype(dtype),
        b1=jnp.zeros((1, hidden_dim), dtype),
        w2=(jax.random.normal(k2, (hidden_dim, dim)) * 0.02).astype(dtype),
        b2=jnp.zeros((1, dim), dtype),
    )


def pack_ffeedforward_params(params_s, params_f):
    """Stack the two branches and zero-pad to lane-dense (128-multiple) shapes
    ONCE, outside the per-call path (avoids per-call pad/stack HBM traffic)."""
    def stk(name):
        return jnp.stack([params_s[name], params_f[name]], axis=0)
    gamma, beta = stk("gamma"), stk("beta")
    w1, b1, w2, b2 = stk("w1"), stk("b1"), stk("w2"), stk("b2")
    D, H = w1.shape[-2], w1.shape[-1]
    pd, ph = _round_up(D, 128) - D, _round_up(H, 128) - H
    if pd:
        gamma = jnp.pad(gamma, ((0, 0), (0, 0), (0, pd)))
        beta = jnp.pad(beta, ((0, 0), (0, 0), (0, pd)))
        b2 = jnp.pad(b2, ((0, 0), (0, 0), (0, pd)))
    if ph:
        b1 = jnp.pad(b1, ((0, 0), (0, 0), (0, ph)))
    if pd or ph:
        w1 = jnp.pad(w1, ((0, 0), (0, pd), (0, ph)))
        w2 = jnp.pad(w2, ((0, 0), (0, ph), (0, pd)))
    return dict(gamma=gamma, beta=beta, w1=w1, b1=b1, w2=w2, b2=b2)


def ffeedforward(x, x_fft, packed, *, block_rows=None, block_h=None,
                 approx_gelu=False):
    """Forward pass of FFeedForward: (net_s(x) + x, net_f(x_fft) + x_fft).

    `packed` comes from pack_ffeedforward_params (pre-stacked / pre-padded).
    Dropout (p=0.0 / inference) is a no-op and omitted.
    """
    B, S, D = x.shape
    N = B * S
    # NOTE: stacking writes one extra copy of both activations to HBM; it buys a
    # branch-parallel leading grid axis and one-branch-at-a-time weight residency.
    xs = jnp.stack([x.reshape(N, D), x_fft.reshape(N, D)], axis=0)
    out = _ff_fused(xs, packed["gamma"], packed["beta"], packed["w1"],
                    packed["b1"], packed["w2"], packed["b2"], D,
                    block_rows=block_rows, block_h=block_h,
                    approx_gelu=approx_gelu)
    return out[0].reshape(B, S, D), out[1].reshape(B, S, D)


def _ref_branch(x2d, p, *, approx_gelu=False):
    """Pure-JAX reference (matches the PyTorch module) for correctness check."""
    x = x2d.astype(jnp.float32)
    mean = jnp.mean(x, axis=-1, keepdims=True)
    var = jnp.mean((x - mean) ** 2, axis=-1, keepdims=True)
    xn = (x - mean) / jnp.sqrt(var + LN_EPS)
    xn = xn * p["gamma"].astype(jnp.float32) + p["beta"].astype(jnp.float32)
    h = xn @ p["w1"].astype(jnp.float32) + p["b1"].astype(jnp.float32)
    if approx_gelu:
        h = 0.5 * h * (1.0 + jnp.tanh(_GELU_TANH_C * (h + 0.044715 * h ** 3)))
    else:
        h = 0.5 * h * (1.0 + lax.erf(h * _INV_SQRT2))
    y = h @ p["w2"].astype(jnp.float32) + p["b2"].astype(jnp.float32)
    return (y + x).astype(x2d.dtype)


if __name__ == "__main__":
    batch, seq, dim, hidden = 2, 8, 32, 64
    key = jax.random.PRNGKey(0)
    kx, kf, ks, kp = jax.random.split(key, 4)

    x = jax.random.normal(kx, (batch, seq, dim), jnp.float32)
    x_fft = jax.random.normal(kf, (batch, seq, dim), jnp.float32)

    # --- Check 1: f32 params, exact erf GELU (parity with torch.nn.GELU()). ---
    params_s = init_branch_params(ks, dim, hidden, jnp.float32)
    params_f = init_branch_params(kp, dim, hidden, jnp.float32)
    packed = pack_ffeedforward_params(params_s, params_f)

    ff = jax.jit(ffeedforward)
    y, y_fft = ff(x, x_fft, packed)
    jax.block_until_ready((y, y_fft))

    y_ref = _ref_branch(x.reshape(-1, dim), params_s).reshape(x.shape)
    yf_ref = _ref_branch(x_fft.reshape(-1, dim), params_f).reshape(x_fft.shape)
    assert jnp.allclose(y, y_ref, atol=1e-4, rtol=1e-4), "f32 branch_s mismatch"
    assert jnp.allclose(y_fft, yf_ref, atol=1e-4, rtol=1e-4), "f32 branch_f mismatch"

    # --- Check 2: bf16 params (MXU fast path) + tanh GELU + forced H tiling,
    # exercising the f32-accumulator multi-H-tile path used on v7x. ---
    dim2, hidden2 = 128, 256
    kx2, kf2, ks2, kp2 = jax.random.split(jax.random.PRNGKey(1), 4)
    x2 = jax.random.normal(kx2, (batch, seq, dim2), jnp.float32)
    x2_fft = jax.random.normal(kf2, (batch, seq, dim2), jnp.float32)
    params_s2 = init_branch_params(ks2, dim2, hidden2, jnp.bfloat16)
    params_f2 = init_branch_params(kp2, dim2, hidden2, jnp.bfloat16)
    packed2 = pack_ffeedforward_params(params_s2, params_f2)

    ff2 = jax.jit(functools.partial(ffeedforward, block_h=128, approx_gelu=True))
    y2, y2_fft = ff2(x2, x2_fft, packed2)
    jax.block_until_ready((y2, y2_fft))

    y2_ref = _ref_branch(x2.reshape(-1, dim2), params_s2,
                         approx_gelu=True).reshape(x2.shape)
    y2f_ref = _ref_branch(x2_fft.reshape(-1, dim2), params_f2,
                          approx_gelu=True).reshape(x2_fft.shape)
    assert jnp.allclose(y2, y2_ref, atol=3e-2, rtol=3e-2), "bf16 branch_s mismatch"
    assert jnp.allclose(y2_fft, y2f_ref, atol=3e-2, rtol=3e-2), "bf16 branch_f mismatch"

    print("KERNEL_OK")
</pallas_src>

<mosaic_0001>
module attributes {stable_mosaic.version = 11 : i64} {
  func.func @_ff_kernel(%arg0: i32, %arg1: i32, %arg2: i32, %arg3: memref<1x16x128xf32, #tpu.memory_space<vmem>>, %arg4: memref<1x1x128xf32, #tpu.memory_space<vmem>>, %arg5: memref<1x1x128xf32, #tpu.memory_space<vmem>>, %arg6: memref<1x128x128xf32, #tpu.memory_space<vmem>>, %arg7: memref<1x1x128xf32, #tpu.memory_space<vmem>>, %arg8: memref<1x128x128xf32, #tpu.memory_space<vmem>>, %arg9: memref<1x1x128xf32, #tpu.memory_space<vmem>>, %arg10: memref<1x16x128xf32, #tpu.memory_space<vmem>>, %arg11: memref<16x128xf32, #tpu.memory_space<vmem>>, %arg12: memref<16x128xf32, #tpu.memory_space<vmem>>) attributes {dimension_semantics = [#tpu.dimension_semantics<parallel>, #tpu.dimension_semantics<parallel>, #tpu.dimension_semantics<arbitrary>], iteration_bounds = array<i64: 2, 1, 1>, scalar_prefetch = 0 : i64, scratch_operands = 2 : i64, tpu.core_type = #tpu.core_type<tc>, window_params = [{transform_indices = @transform_0, window_bounds = array<i64: 1, 16, 128>}, {pipeline_mode = #tpu.pipeline_mode<synchronous>, transform_indices = @transform_1, window_bounds = array<i64: 1, 1, 128>}, {pipeline_mode = #tpu.pipeline_mode<synchronous>, transform_indices = @transform_2, window_bounds = array<i64: 1, 1, 128>}, {transform_indices = @transform_3, window_bounds = array<i64: 1, 128, 128>}, {transform_indices = @transform_4, window_bounds = array<i64: 1, 1, 128>}, {transform_indices = @transform_5, window_bounds = array<i64: 1, 128, 128>}, {pipeline_mode = #tpu.pipeline_mode<synchronous>, transform_indices = @transform_6, window_bounds = array<i64: 1, 1, 128>}, {transform_indices = @transform_7, window_bounds = array<i64: 1, 16, 128>}]} {
    %c0_i32 = arith.constant 0 : i32
    %0 = arith.cmpi eq, %arg2, %c0_i32 : i32
    %1 = arith.extui %0 : i1 to i32
    %c0_i32_0 = arith.constant 0 : i32
    %2 = arith.cmpi ne, %1, %c0_i32_0 : i32
    scf.if %2 {
      %c0_21 = arith.constant 0 : index
      %c0_22 = arith.constant 0 : index
      %c0_23 = arith.constant 0 : index
      %28 = vector.load %arg3[%c0_21, %c0_22, %c0_23] : memref<1x16x128xf32, #tpu.memory_space<vmem>>, vector<1x16x128xf32>
      %29 = vector.shape_cast %28 : vector<1x16x128xf32> to vector<16x128xf32>
      %cst_24 = arith.constant dense<0.000000e+00> : vector<16xf32>
      %30 = vector.multi_reduction <add>, %29, %cst_24 [1] : vector<16x128xf32> to vector<16xf32>
      %31 = vector.shape_cast %30 : vector<16xf32> to vector<16x1xf32>
      %cst_25 = arith.constant 3.125000e-02 : f32
      %32 = vector.broadcast %cst_25 : f32 to vector<16x1xf32>
      %33 = arith.mulf %31, %32 : vector<16x1xf32>
      %34 = vector.broadcast %33 : vector<16x1xf32> to vector<16x128xf32>
      %35 = arith.subf %29, %34 : vector<16x128xf32>
      %36 = tpu.iota {dimensions = array<i32: 1>} : vector<16x128xi32>
      %c32_i32 = arith.constant 32 : i32
      %37 = vector.broadcast %c32_i32 : i32 to vector<16x128xi32>
      %38 = arith.cmpi slt, %36, %37 : vector<16x128xi32>
      %cst_26 = arith.constant 0.000000e+00 : f32
      %39 = vector.broadcast %cst_26 : f32 to vector<16x128xf32>
      %40 = arith.select %38, %35, %39 : vector<16x128xi1>, vector<16x128xf32>
      %41 = arith.mulf %40, %40 : vector<16x128xf32>
      %cst_27 = arith.constant dense<0.000000e+00> : vector<16xf32>
      %42 = vector.multi_reduction <add>, %41, %cst_27 [1] : vector<16x128xf32> to vector<16xf32>
      %43 = vector.shape_cast %42 : vector<16xf32> to vector<16x1xf32>
      %cst_28 = arith.constant 3.125000e-02 : f32
      %44 = vector.broadcast %cst_28 : f32 to vector<16x1xf32>
      %45 = arith.mulf %43, %44 : vector<16x1xf32>
      %cst_29 = arith.constant 9.99999974E-6 : f32
      %46 = vector.broadcast %cst_29 : f32 to vector<16x1xf32>
      %47 = arith.addf %45, %46 : vector<16x1xf32>
      %48 = math.rsqrt %47 : vector<16x1xf32>
      %49 = vector.broadcast %48 : vector<16x1xf32> to vector<16x128xf32>
      %50 = arith.mulf %40, %49 : vector<16x128xf32>
      %c0_30 = arith.constant 0 : index
      %c0_31 = arith.constant 0 : index
      %c0_32 = arith.constant 0 : index
      %51 = vector.load %arg4[%c0_30, %c0_31, %c0_32] : memref<1x1x128xf32, #tpu.memory_space<vmem>>, vector<1x1x128xf32>
      %52 = vector.shape_cast %51 : vector<1x1x128xf32> to vector<1x128xf32>
      %53 = vector.broadcast %52 : vector<1x128xf32> to vector<16x128xf32>
      %54 = arith.mulf %50, %53 : vector<16x128xf32>
      %c0_33 = arith.constant 0 : index
      %c0_34 = arith.constant 0 : index
      %c0_35 = arith.constant 0 : index
      %55 = vector.load %arg5[%c0_33, %c0_34, %c0_35] : memref<1x1x128xf32, #tpu.memory_space<vmem>>, vector<1x1x128xf32>
      %56 = vector.shape_cast %55 : vector<1x1x128xf32> to vector<1x128xf32>
      %57 = vector.broadcast %56 : vector<1x128xf32> to vector<16x128xf32>
      %58 = arith.addf %54, %57 : vector<16x128xf32>
      %c0_36 = arith.constant 0 : index
      %c0_37 = arith.constant 0 : index
      %59 = vector.load %arg11[%c0_36, %c0_37] : memref<16x128xf32, #tpu.memory_space<vmem>>, vector<16x128xf32>
      tpu.vector_store %arg11[%c0_36, %c0_37], %58 {strides = array<i32>} : memref<16x128xf32, #tpu.memory_space<vmem>>, vector<16x128xf32>,
      %cst_38 = arith.constant 0.000000e+00 : f32
      %60 = vector.broadcast %cst_38 : f32 to vector<16x128xf32>
      %c0_39 = arith.constant 0 : index
      %c0_40 = arith.constant 0 : index
      %61 = vector.load %arg12[%c0_39, %c0_40] : memref<16x128xf32, #tpu.memory_space<vmem>>, vector<16x128xf32>
      tpu.vector_store %arg12[%c0_39, %c0_40], %60 {strides = array<i32>} : memref<16x128xf32, #tpu.memory_space<vmem>>, vector<16x128xf32>,
    } else {
    }
    %c0 = arith.constant 0 : index
    %c0_1 = arith.constant 0 : index
    %3 = vector.load %arg11[%c0, %c0_1] : memref<16x128xf32, #tpu.memory_space<vmem>>, vector<16x128xf32>
    %c0_2 = arith.constant 0 : index
    %c0_3 = arith.constant 0 : index
    %c0_4 = arith.constant 0 : index
    %4 = vector.load %arg6[%c0_2, %c0_3, %c0_4] : memref<1x128x128xf32, #tpu.memory_space<vmem>>, vector<1x128x128xf32>
    %5 = vector.shape_cast %4 : vector<1x128x128xf32> to vector<128x128xf32>
    %cst = arith.constant dense<0.000000e+00> : vector<16x128xf32>
    %6 = tpu.matmul %3, %5, %cst {dimension_numbers = #tpu.dot_dimension_numbers<[1], [0], [0], [1], [0, 0, 1, 1], [], []>} : vector<16x128xf32>, vector<128x128xf32>, vector<16x128xf32> -> vector<16x128xf32>
    %c0_5 = arith.constant 0 : index
    %c0_6 = arith.constant 0 : index
    %c0_7 = arith.constant 0 : index
    %7 = vector.load %arg7[%c0_5, %c0_6, %c0_7] : memref<1x1x128xf32, #tpu.memory_space<vmem>>, vector<1x1x128xf32>
    %8 = vector.shape_cast %7 : vector<1x1x128xf32> to vector<1x128xf32>
    %9 = vector.broadcast %8 : vector<1x128xf32> to vector<16x128xf32>
    %10 = arith.addf %6, %9 : vector<16x128xf32>
    %cst_8 = arith.constant 5.000000e-01 : f32
    %11 = vector.broadcast %cst_8 : f32 to vector<16x128xf32>
    %12 = arith.mulf %11, %10 : vector<16x128xf32>
    %cst_9 = arith.constant 0.707106769 : f32
    %13 = vector.broadcast %cst_9 : f32 to vector<16x128xf32>
    %14 = arith.mulf %10, %13 : vector<16x128xf32>
    %15 = math.erf %14 : vector<16x128xf32>
    %cst_10 = arith.constant 1.000000e+00 : f32
    %16 = vector.broadcast %cst_10 : f32 to vector<16x128xf32>
    %17 = arith.addf %16, %15 : vector<16x128xf32>
    %18 = arith.mulf %12, %17 : vector<16x128xf32>
    %c0_11 = arith.constant 0 : index
    %c0_12 = arith.constant 0 : index
    %19 = vector.load %arg12[%c0_11, %c0_12] : memref<16x128xf32, #tpu.memory_space<vmem>>, vector<16x128xf32>
    %c0_13 = arith.constant 0 : index
    %c0_14 = arith.constant 0 : index
    %c0_15 = arith.constant 0 : index
    %20 = vector.load %arg8[%c0_13, %c0_14, %c0_15] : memref<1x128x128xf32, #tpu.memory_space<vmem>>, vector<1x128x128xf32>
    %21 = vector.shape_cast %20 : vector<1x128x128xf32> to vector<128x128xf32>
    %cst_16 = arith.constant dense<0.000000e+00> : vector<16x128xf32>
    %22 = tpu.matmul %18, %21, %cst_16 {dimension_numbers = #tpu.dot_dimension_numbers<[1], [0], [0], [1], [0, 0, 1, 1], [], []>} : vector<16x128xf32>, vector<128x128xf32>, vector<16x128xf32> -> vector<16x128xf32>
    %23 = arith.addf %19, %22 : vector<16x128xf32>
    %c0_17 = arith.constant 0 : index
    %c0_18 = arith.constant 0 : index
    %24 = vector.load %arg12[%c0_17, %c0_18] : memref<16x128xf32, #tpu.memory_space<vmem>>, vector<16x128xf32>
    tpu.vector_store %arg12[%c0_17, %c0_18], %23 {strides = array<i32>} : memref<16x128xf32, #tpu.memory_space<vmem>>, vector<16x128xf32>,
    %c0_i32_19 = arith.constant 0 : i32
    %25 = arith.cmpi eq, %arg2, %c0_i32_19 : i32
    %26 = arith.extui %25 : i1 to i32
    %c0_i32_20 = arith.constant 0 : i32
    %27 = arith.cmpi ne, %26, %c0_i32_20 : i32
    scf.if %27 {
      %c0_21 = arith.constant 0 : index
      %c0_22 = arith.constant 0 : index
      %28 = vector.load %arg12[%c0_21, %c0_22] : memref<16x128xf32, #tpu.memory_space<vmem>>, vector<16x128xf32>
      %c0_23 = arith.constant 0 : index
      %c0_24 = arith.constant 0 : index
      %c0_25 = arith.constant 0 : index
      %29 = vector.load %arg9[%c0_23, %c0_24, %c0_25] : memref<1x1x128xf32, #tpu.memory_space<vmem>>, vector<1x1x128xf32>
      %30 = vector.shape_cast %29 : vector<1x1x128xf32> to vector<1x128xf32>
      %31 = vector.broadcast %30 : vector<1x128xf32> to vector<16x128xf32>
      %32 = arith.addf %28, %31 : vector<16x128xf32>
      %c0_26 = arith.constant 0 : index
      %c0_27 = arith.constant 0 : index
      %c0_28 = arith.constant 0 : index
      %33 = vector.load %arg3[%c0_26, %c0_27, %c0_28] : memref<1x16x128xf32, #tpu.memory_space<vmem>>, vector<1x16x128xf32>
      %34 = vector.shape_cast %33 : vector<1x16x128xf32> to vector<16x128xf32>
      %35 = arith.addf %32, %34 : vector<16x128xf32>
      %c0_29 = arith.constant 0 : index
      %c0_30 = arith.constant 0 : index
      %c0_31 = arith.constant 0 : index
      %36 = vector.load %arg10[%c0_29, %c0_30, %c0_31] : memref<1x16x128xf32, #tpu.memory_space<vmem>>, vector<1x16x128xf32>
      %37 = vector.shape_cast %36 : vector<1x16x128xf32> to vector<16x128xf32>
      %38 = vector.shape_cast %35 : vector<16x128xf32> to vector<1x16x128xf32>
      tpu.vector_store %arg10[%c0_29, %c0_30, %c0_31], %38 {strides = array<i32>} : memref<1x16x128xf32, #tpu.memory_space<vmem>>, vector<1x16x128xf32>,
    } else {
    }
    return
  }
  func.func @transform_0(%arg0: i32, %arg1: i32, %arg2: i32) -> (i32, i32, i32) {
    %c0_i32 = arith.constant 0 : i32
    %c0_i32_0 = arith.constant 0 : i32
    return %arg0, %arg1, %c0_i32 : i32, i32, i32
  }
  func.func @transform_1(%arg0: i32, %arg1: i32, %arg2: i32) -> (i32, i32, i32) {
    %c0_i32 = arith.constant 0 : i32
    %c0_i32_0 = arith.constant 0 : i32
    %c0_i32_1 = arith.constant 0 : i32
    return %arg0, %c0_i32, %c0_i32_0 : i32, i32, i32
  }
  func.func @transform_2(%arg0: i32, %arg1: i32, %arg2: i32) -> (i32, i32, i32) {
    %c0_i32 = arith.constant 0 : i32
    %c0_i32_0 = arith.constant 0 : i32
    %c0_i32_1 = arith.constant 0 : i32
    return %arg0, %c0_i32, %c0_i32_0 : i32, i32, i32
  }
  func.func @transform_3(%arg0: i32, %arg1: i32, %arg2: i32) -> (i32, i32, i32) {
    %c0_i32 = arith.constant 0 : i32
    %c0_i32_0 = arith.constant 0 : i32
    return %arg0, %c0_i32, %arg2 : i32, i32, i32
  }
  func.func @transform_4(%arg0: i32, %arg1: i32, %arg2: i32) -> (i32, i32, i32) {
    %c0_i32 = arith.constant 0 : i32
    %c0_i32_0 = arith.constant 0 : i32
    return %arg0, %c0_i32, %arg2 : i32, i32, i32
  }
  func.func @transform_5(%arg0: i32, %arg1: i32, %arg2: i32) -> (i32, i32, i32) {
    %c0_i32 = arith.constant 0 : i32
    %c0_i32_0 = arith.constant 0 : i32
    return %arg0, %arg2, %c0_i32 : i32, i32, i32
  }
  func.func @transform_6(%arg0: i32, %arg1: i32, %arg2: i32) -> (i32, i32, i32) {
    %c0_i32 = arith.constant 0 : i32
    %c0_i32_0 = arith.constant 0 : i32
    %c0_i32_1 = arith.constant 0 : i32
    return %arg0, %c0_i32, %c0_i32_0 : i32, i32, i32
  }
  func.func @transform_7(%arg0: i32, %arg1: i32, %arg2: i32) -> (i32, i32, i32) {
    %c0_i32 = arith.constant 0 : i32
    %c0_i32_0 = arith.constant 0 : i32
    return %arg0, %arg1, %c0_i32 : i32, i32, i32
  }
}

</mosaic_0001>

<llo_original>
// kernel: ffeedforward.1
$region0: #{ffeedforward.1}
  #allocation0 [shape = 'u32[]', space=smem, size = 0x4, offset = 0x4, fixed_abs, tag = 'smem constant byte address 0x4 - core index']
  #allocation1 [shape = 'u32[144,128]{1,0:T(1,128)}', space=vmem, size = 0x12000, scoped, tag = 'internal scratch']
  #allocation2 [shape = 'f32[16,128]{1,0:T(8,128)}', space=vmem, size = 0x2000, scoped, tag = 'scratch operand']
  #allocation3 [shape = 'f32[16,128]{1,0:T(8,128)}', space=vmem, size = 0x2000, scoped, tag = 'scratch operand']
  %s0 = inlined_call_operand.vmem [shape: f32[2,16,128], index: 0, kind: input, shape index: {}]
  %s1 = inlined_call_operand.vmem [shape: f32[2,1,128], index: 1, kind: input, shape index: {}]
  %s2 = inlined_call_operand.vmem [shape: f32[2,1,128], index: 2, kind: input, shape index: {}]
  %s3 = inlined_call_operand.hbm [shape: f32[2,128,128], index: 3, kind: input, shape index: {}]
  %s4 = inlined_call_operand.vmem [shape: f32[2,1,128], index: 4, kind: input, shape index: {}]
  %s5 = inlined_call_operand.hbm [shape: f32[2,128,128], index: 5, kind: input, shape index: {}]
  %s6 = inlined_call_operand.vmem [shape: f32[2,1,128], index: 6, kind: input, shape index: {}]
  %s7 = inlined_call_operand.vmem [shape: f32[2,16,128], index: 7, kind: output, shape index: {}]
  %s8 = sld [smem:[#allocation0]]
  $region77: #{ffeedforward.1} parent=0
    _
  %s10 = ssub.s32 1, %s8
  %s11 = scalar_select 0, %s10, %s8
  $region1: #{ffeedforward.1} parent=0
    #allocation4 [shape = 'u8[131072]{0}', space=vmem, size = 0x20000, scoped, tag = 'input window, operand 3']
    #allocation5 [shape = 's32[2]{0}', space=sflag, size = 0x8, scoped, tag = 'scoped memory for ffeedforward.1']
    #allocation6 [shape = 'u8[131072]{0}', space=vmem, size = 0x20000, scoped, tag = 'input window, operand 5']
    #allocation7 [shape = 's32[2]{0}', space=sflag, size = 0x8, scoped, tag = 'scoped memory for ffeedforward.1']
    %12 = vsyncpa [#allocation5], 0
    %s13 = scalar_lea.sflag [#allocation5], 1
    %14 = vsyncpa %s13, 0
    %15 = vsyncpa [#allocation7], 0
    %s16 = scalar_lea.sflag [#allocation7], 1
    %17 = vsyncpa %s16, 0
    loop: start=0, step=1, limit=4
    $region2: #{ffeedforward.1} parent=1 // loop_pre_header
      _
    $region3: #{ffeedforward.1} parent=1 // loop_header
      %s19 = sphi 0, %s23
      %p20 = scmp.ge.s32.totalorder %s19, 4
      %s26 = sphi 0, %s45
      %s27 = sphi 0, %s41
      %s28 = sphi 0, %s37
      %s29 = sphi 0, %s26
      %s30 = sphi 0, %s27
      %s31 = sphi 0, %s28
      %s32 = sphi 0, %s29
      %s33 = sphi 0, %s30
      %s34 = sphi 0, %s31
      %s50 = sphi 0, %s52
      %s53 = sphi 0, %s50
      %s54 = sphi 0, %s53
      %s70 = sphi 0, %s54
      %s76 = sphi 0, %s78
      %s79 = sphi 0, %s76
      %s80 = sphi 0, %s79
      %s96 = sphi 0, %s80
      %s102 = sphi 0, %s104
      %s105 = sphi 0, %s102
      %s106 = sphi 0, %s105
      %s122 = sphi 0, %s106
      %s130 = sphi 0, %s132
      %s133 = sphi 0, %s130
      %s134 = sphi 0, %s133
      %s150 = sphi 0, %s134
      %s158 = sphi 0, %s160
      %s161 = sphi 0, %s158
      %s162 = sphi 0, %s161
      %s178 = sphi 0, %s162
      %s186 = sphi 0, %s188
      %s189 = sphi 0, %s186
      %s190 = sphi 0, %s189
      %s206 = sphi 0, %s190
      %s212 = sphi 0, %s214
      %s215 = sphi 0, %s212
      %s216 = sphi 0, %s215
      %s232 = sphi 0, %s216
      %s240 = sphi 0, %s242
      %s243 = sphi 0, %s240
      %s244 = sphi 0, %s243
      %s260 = sphi 0, %s244
    $region4: #{ffeedforward.1} parent=1 // loop_header_branch
      %22 = sbr.rel (%p20) target = $region8
    $region5: #{ffeedforward.1} parent=1 // loop_body
      %s24 = ssub.s32 %s19, 1
      %s25 = ssub.s32 %s19, 2
      %s35 = sadd.s32 1, %s28
      %p36 = scmp.ge.s32.totalorder %s35, 1
      %s37 = scalar_select %p36, 0, %s35
      %s38 = sadd.s32 1, %s27
      %s39 = scalar_select %p36, %s38, %s27
      %p40 = scmp.ge.s32.totalorder %s39, 1
      %s41 = scalar_select %p40, 0, %s39
      %s42 = sadd.s32 1, %s26
      %s43 = scalar_select %p40, %s42, %s26
      %p44 = scmp.ge.s32.totalorder %s43, 2
      %s45 = scalar_select %p44, 0, %s43
      %s46 = ssub.s32 %s26, %s45
      %s47 = ssub.s32 %s27, %s41
      %s48 = sor.u32 %s46, %s47
      %p49 = scmp.eq.s32.totalorder %s48, 0
      %s51 = sadd.s32 %s50, 1
      %s52 = scalar_select %p49, %s50, %s51
      %p55 = pneg %p49
      %p56 = scmp.eq.s32.totalorder %s19, 1
      %p57 = por %p55, %p56
      %p58 = scmp.ne.s32.totalorder %s50, %s53
      %p59 = scmp.eq.s32.totalorder %s19, 0
      %p60 = por %p58, %p59
      %p61 = scmp.ne.s32.totalorder %s50, %s53
      %p62 = scmp.eq.s32.totalorder %s24, 1
      %p63 = por %p61, %p62
      %p64 = scmp.ne.s32.totalorder %s53, %s54
      %p65 = scmp.eq.s32.totalorder %s24, 0
      %p66 = por %p64, %p65
      %p67 = scmp.ne.s32.totalorder %s53, %s54
      %p68 = scmp.eq.s32.totalorder %s25, 1
      %p69 = por %p67, %p68
      %p71 = scmp.ne.s32.totalorder %s54, %s70
      %p72 = scmp.eq.s32.totalorder %s25, 0
      %p73 = por %p71, %p72
      %s74 = ssub.s32 %s26, %s45
      %p75 = scmp.eq.s32.totalorder %s74, 0
      %s77 = sadd.s32 %s76, 1
      %s78 = scalar_select %p75, %s76, %s77
      %p81 = pneg %p75
      %p82 = scmp.eq.s32.totalorder %s19, 1
      %p83 = por %p81, %p82
      %p84 = scmp.ne.s32.totalorder %s76, %s79
      %p85 = scmp.eq.s32.totalorder %s19, 0
      %p86 = por %p84, %p85
      %p87 = scmp.ne.s32.totalorder %s76, %s79
      %p88 = scmp.eq.s32.totalorder %s24, 1
      %p89 = por %p87, %p88
      %p90 = scmp.ne.s32.totalorder %s79, %s80
      %p91 = scmp.eq.s32.totalorder %s24, 0
      %p92 = por %p90, %p91
      %p93 = scmp.ne.s32.totalorder %s79, %s80
      %p94 = scmp.eq.s32.totalorder %s25, 1
      %p95 = por %p93, %p94
      %p97 = scmp.ne.s32.totalorder %s80, %s96
      %p98 = scmp.eq.s32.totalorder %s25, 0
      %p99 = por %p97, %p98
      %s100 = ssub.s32 %s26, %s45
      %p101 = scmp.eq.s32.totalorder %s100, 0
      %s103 = sadd.s32 %s102, 1
      %s104 = scalar_select %p101, %s102, %s103
      %p107 = pneg %p101
      %p108 = scmp.eq.s32.totalorder %s19, 1
      %p109 = por %p107, %p108
      %p110 = scmp.ne.s32.totalorder %s102, %s105
      %p111 = scmp.eq.s32.totalorder %s19, 0
      %p112 = por %p110, %p111
      %p113 = scmp.ne.s32.totalorder %s102, %s105
      %p114 = scmp.eq.s32.totalorder %s24, 1
      %p115 = por %p113, %p114
      %p116 = scmp.ne.s32.totalorder %s105, %s106
      %p117 = scmp.eq.s32.totalorder %s24, 0
      %p118 = por %p116, %p117
      %p119 = scmp.ne.s32.totalorder %s105, %s106
      %p120 = scmp.eq.s32.totalorder %s25, 1
      %p121 = por %p119, %p120
      %p123 = scmp.ne.s32.totalorder %s106, %s122
      %p124 = scmp.eq.s32.totalorder %s25, 0
      %p125 = por %p123, %p124
      %s126 = ssub.s32 %s26, %s45
      %s127 = ssub.s32 %s28, %s37
      %s128 = sor.u32 %s126, %s127
      %p129 = scmp.eq.s32.totalorder %s128, 0
      %s131 = sadd.s32 %s130, 1
      %s132 = scalar_select %p129, %s130, %s131
      %p135 = pneg %p129
      %p136 = scmp.eq.s32.totalorder %s19, 1
      %p137 = por %p135, %p136
      %p138 = scmp.ne.s32.totalorder %s130, %s133
      %p139 = scmp.eq.s32.totalorder %s19, 0
      %p140 = por %p138, %p139
      %p141 = scmp.ne.s32.totalorder %s130, %s133
      %p142 = scmp.eq.s32.totalorder %s24, 1
      %p143 = por %p141, %p142
      %p144 = scmp.ne.s32.totalorder %s133, %s134
      %p145 = scmp.eq.s32.totalorder %s24, 0
      %p146 = por %p144, %p145
      %p147 = scmp.ne.s32.totalorder %s133, %s134
      %p148 = scmp.eq.s32.totalorder %s25, 1
      %p149 = por %p147, %p148
      %p151 = scmp.ne.s32.totalorder %s134, %s150
      %p152 = scmp.eq.s32.totalorder %s25, 0
      %p153 = por %p151, %p152
      %s154 = ssub.s32 %s26, %s45
      %s155 = ssub.s32 %s28, %s37
      %s156 = sor.u32 %s154, %s155
      %p157 = scmp.eq.s32.totalorder %s156, 0
      %s159 = sadd.s32 %s158, 1
      %s160 = scalar_select %p157, %s158, %s159
      %p163 = pneg %p157
      %p164 = scmp.eq.s32.totalorder %s19, 1
      %p165 = por %p163, %p164
      %p166 = scmp.ne.s32.totalorder %s158, %s161
      %p167 = scmp.eq.s32.totalorder %s19, 0
      %p168 = por %p166, %p167
      %p169 = scmp.ne.s32.totalorder %s158, %s161
      %p170 = scmp.eq.s32.totalorder %s24, 1
      %p171 = por %p169, %p170
      %p172 = scmp.ne.s32.totalorder %s161, %s162
      %p173 = scmp.eq.s32.totalorder %s24, 0
      %p174 = por %p172, %p173
      %p175 = scmp.ne.s32.totalorder %s161, %s162
      %p176 = scmp.eq.s32.totalorder %s25, 1
      %p177 = por %p175, %p176
      %p179 = scmp.ne.s32.totalorder %s162, %s178
      %p180 = scmp.eq.s32.totalorder %s25, 0
      %p181 = por %p179, %p180
      %s182 = ssub.s32 %s26, %s45
      %s183 = ssub.s32 %s28, %s37
      %s184 = sor.u32 %s182, %s183
      %p185 = scmp.eq.s32.totalorder %s184, 0
      %s187 = sadd.s32 %s186, 1
      %s188 = scalar_select %p185, %s186, %s187
      %p191 = pneg %p185
      %p192 = scmp.eq.s32.totalorder %s19, 1
      %p193 = por %p191, %p192
      %p194 = scmp.ne.s32.totalorder %s186, %s189
      %p195 = scmp.eq.s32.totalorder %s19, 0
      %p196 = por %p194, %p195
      %p197 = scmp.ne.s32.totalorder %s186, %s189
      %p198 = scmp.eq.s32.totalorder %s24, 1
      %p199 = por %p197, %p198
      %p200 = scmp.ne.s32.totalorder %s189, %s190
      %p201 = scmp.eq.s32.totalorder %s24, 0
      %p202 = por %p200, %p201
      %p203 = scmp.ne.s32.totalorder %s189, %s190
      %p204 = scmp.eq.s32.totalorder %s25, 1
      %p205 = por %p203, %p204
      %p207 = scmp.ne.s32.totalorder %s190, %s206
      %p208 = scmp.eq.s32.totalorder %s25, 0
      %p209 = por %p207, %p208
      %s210 = ssub.s32 %s26, %s45
      %p211 = scmp.eq.s32.totalorder %s210, 0
      %s213 = sadd.s32 %s212, 1
      %s214 = scalar_select %p211, %s212, %s213
      %p217 = pneg %p211
      %p218 = scmp.eq.s32.totalorder %s19, 1
      %p219 = por %p217, %p218
      %p220 = scmp.ne.s32.totalorder %s212, %s215
      %p221 = scmp.eq.s32.totalorder %s19, 0
      %p222 = por %p220, %p221
      %p223 = scmp.ne.s32.totalorder %s212, %s215
      %p224 = scmp.eq.s32.totalorder %s24, 1
      %p225 = por %p223, %p224
      %p226 = scmp.ne.s32.totalorder %s215, %s216
      %p227 = scmp.eq.s32.totalorder %s24, 0
      %p228 = por %p226, %p227
      %p229 = scmp.ne.s32.totalorder %s215, %s216
      %p230 = scmp.eq.s32.totalorder %s25, 1
      %p231 = por %p229, %p230
      %p233 = scmp.ne.s32.totalorder %s216, %s232
      %p234 = scmp.eq.s32.totalorder %s25, 0
      %p235 = por %p233, %p234
      %s236 = ssub.s32 %s26, %s45
      %s237 = ssub.s32 %s27, %s41
      %s238 = sor.u32 %s236, %s237
      %p239 = scmp.eq.s32.totalorder %s238, 0
      %s241 = sadd.s32 %s240, 1
      %s242 = scalar_select %p239, %s240, %s241
      %p245 = pneg %p239
      %p246 = scmp.eq.s32.totalorder %s19, 1
      %p247 = por %p245, %p246
      %p248 = scmp.ne.s32.totalorder %s240, %s243
      %p249 = scmp.eq.s32.totalorder %s19, 0
      %p250 = por %p248, %p249
      %p251 = scmp.ne.s32.totalorder %s240, %s243
      %p252 = scmp.eq.s32.totalorder %s24, 1
      %p253 = por %p251, %p252
      %p254 = scmp.ne.s32.totalorder %s243, %s244
      %p255 = scmp.eq.s32.totalorder %s24, 0
      %p256 = por %p254, %p255
      %p257 = scmp.ne.s32.totalorder %s243, %s244
      %p258 = scmp.eq.s32.totalorder %s25, 1
      %p259 = por %p257, %p258
      %p261 = scmp.ne.s32.totalorder %s244, %s260
      %p262 = scmp.eq.s32.totalorder %s25, 0
      %p263 = por %p261, %p262
      %p264 = scmp.le.s32.totalorder 1, %s19
      %p265 = scmp.lt.s32.totalorder %s19, 3
      %p266 = pnand %p264, %p265
      %p267 = pneg %p266
      // Predicated region
      $region9: #{ffeedforward.1} parent=5 // pred_check
        _
      $region10: #{ffeedforward.1} parent=5 // pred_check_branch
        %269 = sbr.rel (%p266) target = $region12
      $region11: #{ffeedforward.1} parent=5 // pred_region
        %s270 = ssub.s32 %s19, 1
        // Predicated region
        $region13: #{ffeedforward.1} parent=11 // pred_check
          %p271 = pneg %p92
        $region14: #{ffeedforward.1} parent=11 // pred_check_branch
          %273 = sbr.rel (%p271) target = $region16
        $region15: #{ffeedforward.1} parent=11 // pred_region
          %p274 = scmp.lt.s32.totalorder %s29, 1
          %s275 = scalar_select %p274, %s29, 1
          %s276 = scalar_lea.vmem %s1, %s275
        $region16: #{ffeedforward.1} parent=11 // pred_fallthru
          _
        // Predicated region
        $region17: #{ffeedforward.1} parent=11 // pred_check
          %p277 = pneg %p118
        $region18: #{ffeedforward.1} parent=11 // pred_check_branch
          %279 = sbr.rel (%p277) target = $region20
        $region19: #{ffeedforward.1} parent=11 // pred_region
          %p280 = scmp.lt.s32.totalorder %s29, 1
          %s281 = scalar_select %p280, %s29, 1
          %s282 = scalar_lea.vmem %s2, %s281
        $region20: #{ffeedforward.1} parent=11 // pred_fallthru
          _
        // Predicated region
        $region21: #{ffeedforward.1} parent=11 // pred_check
          %p283 = pneg %p228
        $region22: #{ffeedforward.1} parent=11 // pred_check_branch
          %285 = sbr.rel (%p283) target = $region24
        $region23: #{ffeedforward.1} parent=11 // pred_region
          %p286 = scmp.lt.s32.totalorder %s29, 1
          %s287 = scalar_select %p286, %s29, 1
          %s288 = scalar_lea.vmem %s6, %s287
        $region24: #{ffeedforward.1} parent=11 // pred_fallthru
          _
      $region12: #{ffeedforward.1} parent=5 // pred_fallthru
        _
      %p289 = scmp.lt.s32.totalorder %s19, 2
      // Predicated region
      $region25: #{ffeedforward.1} parent=5 // pred_check
        %p290 = pneg %p289
      $region26: #{ffeedforward.1} parent=5 // pred_check_branch
        %292 = sbr.rel (%p290) target = $region28
      $region27: #{ffeedforward.1} parent=5 // pred_region
        // Predicated region
        $region29: #{ffeedforward.1} parent=27 // pred_check
          %p293 = pneg %p60
        $region30: #{ffeedforward.1} parent=27 // pred_check_branch
          %295 = sbr.rel (%p293) target = $region32
        $region31: #{ffeedforward.1} parent=27 // pred_region
          %s296 = smul.u32 2, %s27
          %p297 = scmp.lt.s32.totalorder %s26, 1
          %s298 = scalar_select %p297, %s26, 1
          %p299 = scmp.lt.s32.totalorder %s296, 1
          %s300 = scalar_select %p299, %s296, 1
          %s301 = smul.addr %s298, 2
          %s302 = sadd.s32 %s300, %s301
          %s303 = smul.addr %s302, 8
          %s304 = scalar_lea.vmem %s0, %s303
          %s305 = smul.u32 2, %s27
        $region32: #{ffeedforward.1} parent=27 // pred_fallthru
          _
        // Predicated region
        $region33: #{ffeedforward.1} parent=27 // pred_check
          %p306 = pneg %p140
        $region34: #{ffeedforward.1} parent=27 // pred_check_branch
          %308 = sbr.rel (%p306) target = $region36
        $region35: #{ffeedforward.1} parent=27 // pred_region
          %s309 = sand.u32 %s130, 1
          %s310 = scalar_lea.sflag [#allocation5], %s309
          %s311 = sand.u32 %s130, 1
          %s312 = smul.addr %s311, 128
          %s313 = scalar_lea.vmem [#allocation4], %s312
          %s315 = ssub.s32 2048, 2048
          %316 = vsyncadd %s310, %s315
          %s317 = smul.addr %s26, 16
          %s318 = sadd.s32 %s28, %s317
          %s319 = smul.addr %s318, 128
          %s320 = scalar_lea.hbm %s3, %s319
          %s321 = sshll.u32 %s313, 4
          %s322 = int_to_ptr.vmem [resolvable:$true] %s321
          %327 = dma.hbm_to_vmem [thread:$0]  %s320, 2048, %s322, %s310, 128, 128, 8
        $region36: #{ffeedforward.1} parent=27 // pred_fallthru
          _
        // Predicated region
        $region37: #{ffeedforward.1} parent=27 // pred_check
          %p328 = pneg %p168
        $region38: #{ffeedforward.1} parent=27 // pred_check_branch
          %330 = sbr.rel (%p328) target = $region40
        $region39: #{ffeedforward.1} parent=27 // pred_region
          %p331 = scmp.lt.s32.totalorder %s26, 1
          %s332 = scalar_select %p331, %s26, 1
          %p333 = scmp.lt.s32.totalorder %s28, 0
          %s334 = scalar_select %p333, %s28, 0
          %s335 = sadd.s32 %s334, %s332
          %s336 = scalar_lea.vmem %s4, %s335
        $region40: #{ffeedforward.1} parent=27 // pred_fallthru
          _
        // Predicated region
        $region41: #{ffeedforward.1} parent=27 // pred_check
          %p337 = pneg %p196
        $region42: #{ffeedforward.1} parent=27 // pred_check_branch
          %339 = sbr.rel (%p337) target = $region44
        $region43: #{ffeedforward.1} parent=27 // pred_region
          %s340 = sand.u32 %s186, 1
          %s341 = scalar_lea.sflag [#allocation7], %s340
          %s342 = sand.u32 %s186, 1
          %s343 = smul.addr %s342, 128
          %s344 = scalar_lea.vmem [#allocation6], %s343
          %s345 = smul.u32 16, %s28
          %s347 = ssub.s32 2048, 2048
          %348 = vsyncadd %s341, %s347
          %s349 = smul.addr %s26, 16
          %s350 = sadd.s32 %s345, %s349
          %s351 = smul.addr %s350, 128
          %s352 = scalar_lea.hbm %s5, %s351
          %s353 = sshll.u32 %s344, 4
          %s354 = int_to_ptr.vmem [resolvable:$true] %s353
          %359 = dma.hbm_to_vmem [thread:$0]  %s352, 2048, %s354, %s341, 128, 128, 8
        $region44: #{ffeedforward.1} parent=27 // pred_fallthru
          _
      $region28: #{ffeedforward.1} parent=5 // pred_fallthru
        _
      %p360 = scmp.le.s32.totalorder 1, %s19
      %p361 = scmp.lt.s32.totalorder %s19, 3
      %p362 = pnand %p360, %p361
      %p363 = pneg %p362
      // Predicated region
      $region45: #{ffeedforward.1} parent=5 // pred_check
        _
      $region46: #{ffeedforward.1} parent=5 // pred_check_branch
        %365 = sbr.rel (%p362) target = $region48
      $region47: #{ffeedforward.1} parent=5 // pred_region
        %s366 = ssub.s32 %s19, 1
        %s367 = sand.u32 %s133, 1
        %s368 = scalar_lea.sflag [#allocation5], %s367
        %s369 = sand.u32 %s133, 1
        %s370 = smul.addr %s369, 128
        %s371 = scalar_lea.vmem [#allocation4], %s370
        // Predicated region
        $region49: #{ffeedforward.1} parent=47 // pred_check
          %p372 = pneg %p146
        $region50: #{ffeedforward.1} parent=47 // pred_check_branch
          %374 = sbr.rel (%p372) target = $region52
        $region51: #{ffeedforward.1} parent=47 // pred_region
          %375 = dma.done %s368, 2048
        $region52: #{ffeedforward.1} parent=47 // pred_fallthru
          _
        %s376 = sand.u32 %s189, 1
        %s377 = scalar_lea.sflag [#allocation7], %s376
        %s378 = sand.u32 %s189, 1
        %s379 = smul.addr %s378, 128
        %s380 = scalar_lea.vmem [#allocation6], %s379
        // Predicated region
        $region53: #{ffeedforward.1} parent=47 // pred_check
          %p381 = pneg %p202
        $region54: #{ffeedforward.1} parent=47 // pred_check_branch
          %383 = sbr.rel (%p381) target = $region56
        $region55: #{ffeedforward.1} parent=47 // pred_region
          %384 = dma.done %s377, 2048
        $region56: #{ffeedforward.1} parent=47 // pred_fallthru
          _
        %s385 = smul.u32 2, %s30
        %p386 = scmp.lt.s32.totalorder %s29, 1
        %s387 = scalar_select %p386, %s29, 1
        %p388 = scmp.lt.s32.totalorder %s385, 1
        %s389 = scalar_select %p388, %s385, 1
        %s390 = smul.addr %s387, 2
        %s391 = sadd.s32 %s389, %s390
        %s392 = smul.addr %s391, 8
        %s393 = scalar_lea.vmem %s0, %s392
        %p394 = pneg %p66
        %p395 = pneg %p63
        %p396 = scmp.lt.s32.totalorder %s29, 1
        %s397 = scalar_select %p396, %s29, 1
        %s398 = scalar_lea.vmem %s1, %s397
        %p399 = pneg %p92
        %p400 = pneg %p89
        %p401 = scmp.lt.s32.totalorder %s29, 1
        %s402 = scalar_select %p401, %s29, 1
        %s403 = scalar_lea.vmem %s2, %s402
        %p404 = pneg %p118
        %p405 = pneg %p115
        %s406 = sand.u32 %s133, 1
        %s407 = scalar_lea.sflag [#allocation5], %s406
        %s408 = sand.u32 %s133, 1
        %s409 = smul.addr %s408, 128
        %s410 = scalar_lea.vmem [#allocation4], %s409
        %p411 = pneg %p146
        %p412 = pneg %p143
        %p413 = scmp.lt.s32.totalorder %s29, 1
        %s414 = scalar_select %p413, %s29, 1
        %p415 = scmp.lt.s32.totalorder %s31, 0
        %s416 = scalar_select %p415, %s31, 0
        %s417 = sadd.s32 %s416, %s414
        %s418 = scalar_lea.vmem %s4, %s417
        %p419 = pneg %p174
        %p420 = pneg %p171
        %s421 = sand.u32 %s189, 1
        %s422 = scalar_lea.sflag [#allocation7], %s421
        %s423 = sand.u32 %s189, 1
        %s424 = smul.addr %s423, 128
        %s425 = scalar_lea.vmem [#allocation6], %s424
        %p426 = pneg %p202
        %p427 = pneg %p199
        %p428 = scmp.lt.s32.totalorder %s29, 1
        %s429 = scalar_select %p428, %s29, 1
        %s430 = scalar_lea.vmem %s6, %s429
        %p431 = pneg %p228
        %p432 = pneg %p225
        %p433 = pneg %p256
        %p434 = pneg %p253
        %s435 = smul.u32 2, %s30
        %p436 = scmp.lt.s32.totalorder %s29, 1
        %s437 = scalar_select %p436, %s29, 1
        %p438 = scmp.lt.s32.totalorder %s435, 1
        %s439 = scalar_select %p438, %s435, 1
        %s440 = smul.addr %s437, 2
        %s441 = sadd.s32 %s439, %s440
        %s442 = smul.addr %s441, 8
        %s443 = scalar_lea.vmem %s7, %s442
        %s444 = smul.u32 2, %s30
        %p445 = scmp.lt.s32.totalorder %s29, 1
        %s446 = scalar_select %p445, %s29, 1
        %p447 = scmp.lt.s32.totalorder %s444, 1
        %s448 = scalar_select %p447, %s444, 1
        %s449 = smul.addr %s446, 2
        %s450 = sadd.s32 %s448, %s449
        %s451 = smul.addr %s450, 8
        %s452 = scalar_lea.vmem %s0, %s451
        %s453 = smul.u32 2, %s30
        %p454 = scmp.lt.s32.totalorder %s29, 1
        %s455 = scalar_select %p454, %s29, 1
        %s456 = scalar_lea.vmem %s1, %s455
        %p457 = scmp.lt.s32.totalorder %s29, 1
        %s458 = scalar_select %p457, %s29, 1
        %s459 = scalar_lea.vmem %s2, %s458
        %p460 = scmp.lt.s32.totalorder %s29, 1
        %s461 = scalar_select %p460, %s29, 1
        %p462 = scmp.lt.s32.totalorder %s31, 0
        %s463 = scalar_select %p462, %s31, 0
        %s464 = sadd.s32 %s463, %s461
        %s465 = scalar_lea.vmem %s4, %s464
        %s466 = smul.u32 16, %s31
        %p467 = scmp.lt.s32.totalorder %s29, 1
        %s468 = scalar_select %p467, %s29, 1
        %s469 = scalar_lea.vmem %s6, %s468
        %s470 = smul.u32 2, %s30
        %p471 = scmp.lt.s32.totalorder %s29, 1
        %s472 = scalar_select %p471, %s29, 1
        %p473 = scmp.lt.s32.totalorder %s470, 1
        %s474 = scalar_select %p473, %s470, 1
        %s475 = smul.addr %s472, 2
        %s476 = sadd.s32 %s474, %s475
        %s477 = smul.addr %s476, 8
        %s478 = scalar_lea.vmem %s7, %s477
        %s479 = smul.u32 2, %s30
        %p480 = scmp.eq.s32.totalorder %s31, 0
        // Predicated region
        $region57: #{ffeedforward.1} parent=47 // pred_check
          %p481 = pneg %p480
        $region58: #{ffeedforward.1} parent=47 // pred_check_branch
          %483 = sbr.rel (%p481) target = $region60
        $region59: #{ffeedforward.1} parent=47 // pred_region
          %v484 = vld [vmem:[%s452] sm:$0xff]
          %v485 = vld [vmem:[%s452 + $0x8] sm:$0xff]
          %486 = vadd.xlane.f32.xlu0 %v484
          %v487 = vpop.xlane.xlu0 %486
          %488 = vadd.xlane.f32.xlu0 %v485
          %v489 = vpop.xlane.xlu0 %488
          %v490 = vmul.f32 %v487, 0.03125
          %v491 = vmul.f32 %v489, 0.03125
          %v492 = vsub.f32 %v484, %v490
          %v493 = vsub.f32 %v485, %v491
          %v494 = vlaneseq
          %v495 = vand.u32 %v494, 127
          %vm496 = vcmp.lt.s32.totalorder %v495, 32
          %v497 = vsel %vm496, %v492, 0.0
          %v498 = vsel %vm496, %v493, 0.0
          %v499 = vmul.f32 %v497, %v497
          %v500 = vmul.f32 %v498, %v498
          %501 = vadd.xlane.f32.xlu0 %v499
          %v502 = vpop.xlane.xlu0 %501
          %503 = vadd.xlane.f32.xlu0 %v500
          %v504 = vpop.xlane.xlu0 %503
          %v505 = vmul.f32 %v502, 0.03125
          %v506 = vmul.f32 %v504, 0.03125
          %v507 = vadd.f32 %v505, 1e-05
          %v508 = vadd.f32 %v506, 1e-05
          %v509 = vrsqrt.pop %v507
          %v510 = vrsqrt.pop %v508
          %v511 = vmul.f32 %v497, %v509
          %v512 = vmul.f32 %v498, %v510
          %v513 = vld [vmem:[%s456] sm:$0x1]
          %v515 = vlaneseq
          %v516 = vshrl.u32 %v515, 7
          %v517 = vsub.s32 0, %v516
          %v518 = vrot.slane %v513, %v517
          %v520 = vmul.f32 %v511, %v518
          %v521 = vmul.f32 %v512, %v518
          %v522 = vld [vmem:[%s459] sm:$0x1]
          %v524 = vlaneseq
          %v525 = vshrl.u32 %v524, 7
          %v526 = vsub.s32 0, %v525
          %v527 = vrot.slane %v522, %v526
          %v529 = vadd.f32 %v520, %v527
          %v530 = vadd.f32 %v521, %v527
          %531 = vst [vmem:[#allocation2] sm:$0xff] %v529
          %532 = vst [vmem:[#allocation2 + $0x8] sm:$0xff] %v530
          %533 = vst [vmem:[#allocation3] sm:$0xff] 0.0
          %534 = vst [vmem:[#allocation3 + $0x8] sm:$0xff] 0.0
        $region60: #{ffeedforward.1} parent=47 // pred_fallthru
          _
        %v535 = vld [vmem:[#allocation2] sm:$0xff]
        %v536 = vld [vmem:[#allocation2 + $0x8] sm:$0xff]
        %v537 = vld [vmem:[%s371] sm:$0xff]
        %v538 = vld [vmem:[%s371 + $0x8] sm:$0xff]
        %v539 = vld [vmem:[%s371 + $0x10] sm:$0xff]
        %v540 = vld [vmem:[%s371 + $0x18] sm:$0xff]
        %v541 = vld [vmem:[%s371 + $0x20] sm:$0xff]
        %v542 = vld [vmem:[%s371 + $0x28] sm:$0xff]
        %v543 = vld [vmem:[%s371 + $0x30] sm:$0xff]
        %v544 = vld [vmem:[%s371 + $0x38] sm:$0xff]
        %v545 = vld [vmem:[%s371 + $0x40] sm:$0xff]
        %v546 = vld [vmem:[%s371 + $0x48] sm:$0xff]
        %v547 = vld [vmem:[%s371 + $0x50] sm:$0xff]
        %v548 = vld [vmem:[%s371 + $0x58] sm:$0xff]
        %v549 = vld [vmem:[%s371 + $0x60] sm:$0xff]
        %v550 = vld [vmem:[%s371 + $0x68] sm:$0xff]
        %v551 = vld [vmem:[%s371 + $0x70] sm:$0xff]
        %v552 = vld [vmem:[%s371 + $0x78] sm:$0xff]
        %v553 = vld [vmem:[%s465] sm:$0x1]
        %v555 = vlaneseq
        %v556 = vshrl.u32 %v555, 7
        %v557 = vsub.s32 0, %v556
        %v558 = vrot.slane %v553, %v557
        %560 = vmatprep.subr.mxu0 0.0
        %561 = vmatpush1.msra.mxu0 %v552
        %562 = vmatprep.subr.mxu0 0.0
        %563 = vmatpush1.msra.mxu0 %v551
        %564 = vmatprep.subr.mxu0 0.0
        %565 = vmatpush1.msra.mxu0 %v550
        %566 = vmatprep.subr.mxu0 0.0
        %567 = vmatpush1.msra.mxu0 %v549
        %568 = vmatprep.subr.mxu0 0.0
        %569 = vmatpush1.msra.mxu0 %v548
        %570 = vmatprep.subr.mxu0 0.0
        %571 = vmatpush1.msra.mxu0 %v547
        %572 = vmatprep.subr.mxu0 0.0
        %573 = vmatpush1.msra.mxu0 %v546
        %574 = vmatprep.subr.mxu0 0.0
        %575 = vmatpush1.msra.mxu0 %v545
        %576 = vmatprep.subr.mxu0 0.0
        %577 = vmatpush1.msra.mxu0 %v544
        %578 = vmatprep.subr.mxu0 0.0
        %579 = vmatpush1.msra.mxu0 %v543
        %580 = vmatprep.subr.mxu0 0.0
        %581 = vmatpush1.msra.mxu0 %v542
        %582 = vmatprep.subr.mxu0 0.0
        %583 = vmatpush1.msra.mxu0 %v541
        %584 = vmatprep.subr.mxu0 0.0
        %585 = vmatpush1.msra.mxu0 %v540
        %586 = vmatprep.subr.mxu0 0.0
        %587 = vmatpush1.msra.mxu0 %v539
        %588 = vmatprep.subr.mxu0 0.0
        %589 = vmatpush1.msra.mxu0 %v538
        %590 = vmatprep.subr.mxu0 0.0
        %591 = vmatpush1.msra.mxu0 %v537
        %592 = vmatprep.subr.mxu0 0.0
        %593 = vmatpush2.msra.mxu0 0.0
        %594 = vmatprep.subr.mxu0 0.0
        %595 = vmatpush2.msra.mxu0 0.0
        %596 = vmatprep.subr.mxu0 0.0
        %597 = vmatpush2.msra.mxu0 0.0
        %598 = vmatprep.subr.mxu0 0.0
        %599 = vmatpush2.msra.mxu0 0.0
        %600 = vmatprep.subr.mxu0 0.0
        %601 = vmatpush2.msra.mxu0 0.0
        %602 = vmatprep.subr.mxu0 0.0
        %603 = vmatpush2.msra.mxu0 0.0
        %604 = vmatprep.subr.mxu0 0.0
        %605 = vmatpush2.msra.mxu0 0.0
        %606 = vmatprep.subr.mxu0 0.0
        %607 = vmatpush2.msra.mxu0 0.0
        %608 = vmatprep.subr.mxu0 0.0
        %609 = vmatpush2.msra.mxu0 0.0
        %610 = vmatprep.subr.mxu0 0.0
        %611 = vmatpush2.msra.mxu0 0.0
        %612 = vmatprep.subr.mxu0 0.0
        %613 = vmatpush2.msra.mxu0 0.0
        %614 = vmatprep.subr.mxu0 0.0
        %615 = vmatpush2.msra.mxu0 0.0
        %616 = vmatprep.subr.mxu0 0.0
        %617 = vmatpush2.msra.mxu0 0.0
        %618 = vmatprep.subr.mxu0 0.0
        %619 = vmatpush2.msra.mxu0 0.0
        %620 = vmatprep.subr.mxu0 0.0
        %621 = vmatpush2.msra.mxu0 0.0
        %622 = vmatprep.subr.mxu0 0.0
        %623 = vmatpush2.msra.mxu0 0.0
        %624 = vmatprep.mubr.f32.mxu0 0.0
        %625 = vmatmul.mubr.f32.gmra.mxu0 %v535
        %v626 = vpop.f32.mrf.mxu0
        %v627 = vadd.f32 %v558, %v626
        %v628 = vpop.f32.mrf.mxu0
        %629 = vmatprep.mubr.f32.mxu0 0.0
        %630 = vmatmul.mubr.f32.gmra.mxu0 %v536
        %v631 = vpop.f32.mrf.mxu0
        %v632 = vadd.f32 %v558, %v631
        %v633 = vpop.f32.mrf.mxu0
        %634 = vdwg.mxu0
        %v635 = vmul.f32 %v627, 0.5
        %v636 = vmul.f32 %v632, 0.5
        %v637 = vmul.f32 %v627, 0.70710677
        %v638 = vmul.f32 %v632, 0.70710677
        %v639 = verf.f32.pop %v637
        %v640 = verf.f32.pop %v638
        %v641 = vadd.f32 %v639, 1.0
        %v642 = vadd.f32 %v640, 1.0
        %v643 = vmul.f32 %v635, %v641
        %v644 = vmul.f32 %v636, %v642
        %v645 = vld [vmem:[#allocation3] sm:$0xff]
        %v646 = vld [vmem:[#allocation3 + $0x8] sm:$0xff]
        %v647 = vld [vmem:[%s380] sm:$0xff]
        %v648 = vld [vmem:[%s380 + $0x8] sm:$0xff]
        %v649 = vld [vmem:[%s380 + $0x10] sm:$0xff]
        %v650 = vld [vmem:[%s380 + $0x18] sm:$0xff]
        %v651 = vld [vmem:[%s380 + $0x20] sm:$0xff]
        %v652 = vld [vmem:[%s380 + $0x28] sm:$0xff]
        %v653 = vld [vmem:[%s380 + $0x30] sm:$0xff]
        %v654 = vld [vmem:[%s380 + $0x38] sm:$0xff]
        %v655 = vld [vmem:[%s380 + $0x40] sm:$0xff]
        %v656 = vld [vmem:[%s380 + $0x48] sm:$0xff]
        %v657 = vld [vmem:[%s380 + $0x50] sm:$0xff]
        %v658 = vld [vmem:[%s380 + $0x58] sm:$0xff]
        %v659 = vld [vmem:[%s380 + $0x60] sm:$0xff]
        %v660 = vld [vmem:[%s380 + $0x68] sm:$0xff]
        %v661 = vld [vmem:[%s380 + $0x70] sm:$0xff]
        %v662 = vld [vmem:[%s380 + $0x78] sm:$0xff]
        %663 = vmatprep.subr.mxu0 0.0
        %664 = vmatpush1.msra.mxu0 %v662
        %665 = vmatprep.subr.mxu0 0.0
        %666 = vmatpush1.msra.mxu0 %v661
        %667 = vmatprep.subr.mxu0 0.0
        %668 = vmatpush1.msra.mxu0 %v660
        %669 = vmatprep.subr.mxu0 0.0
        %670 = vmatpush1.msra.mxu0 %v659
        %671 = vmatprep.subr.mxu0 0.0
        %672 = vmatpush1.msra.mxu0 %v658
        %673 = vmatprep.subr.mxu0 0.0
        %674 = vmatpush1.msra.mxu0 %v657
        %675 = vmatprep.subr.mxu0 0.0
        %676 = vmatpush1.msra.mxu0 %v656
        %677 = vmatprep.subr.mxu0 0.0
        %678 = vmatpush1.msra.mxu0 %v655
        %679 = vmatprep.subr.mxu0 0.0
        %680 = vmatpush1.msra.mxu0 %v654
        %681 = vmatprep.subr.mxu0 0.0
        %682 = vmatpush1.msra.mxu0 %v653
        %683 = vmatprep.subr.mxu0 0.0
        %684 = vmatpush1.msra.mxu0 %v652
        %685 = vmatprep.subr.mxu0 0.0
        %686 = vmatpush1.msra.mxu0 %v651
        %687 = vmatprep.subr.mxu0 0.0
        %688 = vmatpush1.msra.mxu0 %v650
        %689 = vmatprep.subr.mxu0 0.0
        %690 = vmatpush1.msra.mxu0 %v649
        %691 = vmatprep.subr.mxu0 0.0
        %692 = vmatpush1.msra.mxu0 %v648
        %693 = vmatprep.subr.mxu0 0.0
        %694 = vmatpush1.msra.mxu0 %v647
        %695 = vmatprep.subr.mxu0 0.0
        %696 = vmatpush2.msra.mxu0 0.0
        %697 = vmatprep.subr.mxu0 0.0
        %698 = vmatpush2.msra.mxu0 0.0
        %699 = vmatprep.subr.mxu0 0.0
        %700 = vmatpush2.msra.mxu0 0.0
        %701 = vmatprep.subr.mxu0 0.0
        %702 = vmatpush2.msra.mxu0 0.0
        %703 = vmatprep.subr.mxu0 0.0
        %704 = vmatpush2.msra.mxu0 0.0
        %705 = vmatprep.subr.mxu0 0.0
        %706 = vmatpush2.msra.mxu0 0.0
        %707 = vmatprep.subr.mxu0 0.0
        %708 = vmatpush2.msra.mxu0 0.0
        %709 = vmatprep.subr.mxu0 0.0
        %710 = vmatpush2.msra.mxu0 0.0
        %711 = vmatprep.subr.mxu0 0.0
        %712 = vmatpush2.msra.mxu0 0.0
        %713 = vmatprep.subr.mxu0 0.0
        %714 = vmatpush2.msra.mxu0 0.0
        %715 = vmatprep.subr.mxu0 0.0
        %716 = vmatpush2.msra.mxu0 0.0
        %717 = vmatprep.subr.mxu0 0.0
        %718 = vmatpush2.msra.mxu0 0.0
        %719 = vmatprep.subr.mxu0 0.0
        %720 = vmatpush2.msra.mxu0 0.0
        %721 = vmatprep.subr.mxu0 0.0
        %722 = vmatpush2.msra.mxu0 0.0
        %723 = vmatprep.subr.mxu0 0.0
        %724 = vmatpush2.msra.mxu0 0.0
        %725 = vmatprep.subr.mxu0 0.0
        %726 = vmatpush2.msra.mxu0 0.0
        %727 = vmatprep.mubr.f32.mxu0 0.0
        %728 = vmatmul.mubr.f32.gmra.mxu0 %v643
        %v729 = vpop.f32.mrf.mxu0
        %v730 = vadd.f32 0.0, %v729
        %v731 = vpop.f32.mrf.mxu0
        %732 = vmatprep.mubr.f32.mxu0 0.0
        %733 = vmatmul.mubr.f32.gmra.mxu0 %v644
        %v734 = vpop.f32.mrf.mxu0
        %v735 = vadd.f32 0.0, %v734
        %v736 = vpop.f32.mrf.mxu0
        %737 = vdwg.mxu0
        %v738 = vadd.f32 %v645, %v730
        %v739 = vadd.f32 %v646, %v735
        %740 = vst [vmem:[#allocation3] sm:$0xff] %v738
        %741 = vst [vmem:[#allocation3 + $0x8] sm:$0xff] %v739
        // Predicated region
        $region61: #{ffeedforward.1} parent=47 // pred_check
          %p742 = pneg %p480
        $region62: #{ffeedforward.1} parent=47 // pred_check_branch
          %744 = sbr.rel (%p742) target = $region64
        $region63: #{ffeedforward.1} parent=47 // pred_region
          %v745 = vld [vmem:[#allocation3] sm:$0xff]
          %v746 = vld [vmem:[#allocation3 + $0x8] sm:$0xff]
          %v747 = vld [vmem:[%s469] sm:$0x1]
          %v749 = vlaneseq
          %v750 = vshrl.u32 %v749, 7
          %v751 = vsub.s32 0, %v750
          %v752 = vrot.slane %v747, %v751
          %v754 = vadd.f32 %v745, %v752
          %v755 = vadd.f32 %v746, %v752
          %v756 = vld [vmem:[%s452] sm:$0xff]
          %v757 = vld [vmem:[%s452 + $0x8] sm:$0xff]
          %v758 = vadd.f32 %v754, %v756
          %v759 = vadd.f32 %v755, %v757
          %760 = vst [vmem:[%s478] sm:$0xff] %v758
          %761 = vst [vmem:[%s478 + $0x8] sm:$0xff] %v759
        $region64: #{ffeedforward.1} parent=47 // pred_fallthru
          _
        %s762 = smul.u32 2, %s30
        %p763 = scmp.lt.s32.totalorder %s29, 1
        %s764 = scalar_select %p763, %s29, 1
        %p765 = scmp.lt.s32.totalorder %s762, 1
        %s766 = scalar_select %p765, %s762, 1
        %s767 = smul.addr %s764, 2
        %s768 = sadd.s32 %s766, %s767
        %s769 = smul.addr %s768, 8
        %s770 = scalar_lea.vmem %s7, %s769
        // Predicated region
        $region65: #{ffeedforward.1} parent=47 // pred_check
          %p771 = pneg %p253
        $region66: #{ffeedforward.1} parent=47 // pred_check_branch
          %773 = sbr.rel (%p771) target = $region68
        $region67: #{ffeedforward.1} parent=47 // pred_region
          %s774 = smul.u32 2, %s30
        $region68: #{ffeedforward.1} parent=47 // pred_fallthru
          _
      $region48: #{ffeedforward.1} parent=5 // pred_fallthru
        _
      %p775 = scmp.le.s32.totalorder 2, %s19
      // Predicated region
      $region69: #{ffeedforward.1} parent=5 // pred_check
        %p776 = pneg %p775
      $region70: #{ffeedforward.1} parent=5 // pred_check_branch
        %778 = sbr.rel (%p776) target = $region72
      $region71: #{ffeedforward.1} parent=5 // pred_region
        %s779 = ssub.s32 %s19, 2
        // Predicated region
        $region73: #{ffeedforward.1} parent=71 // pred_check
          %p780 = pneg %p259
        $region74: #{ffeedforward.1} parent=71 // pred_check_branch
          %782 = sbr.rel (%p780) target = $region76
        $region75: #{ffeedforward.1} parent=71 // pred_region
          %s783 = smul.u32 2, %s33
          %p784 = scmp.lt.s32.totalorder %s32, 1
          %s785 = scalar_select %p784, %s32, 1
          %p786 = scmp.lt.s32.totalorder %s783, 1
          %s787 = scalar_select %p786, %s783, 1
          %s788 = smul.addr %s785, 2
          %s789 = sadd.s32 %s787, %s788
          %s790 = smul.addr %s789, 8
          %s791 = scalar_lea.vmem %s7, %s790
        $region76: #{ffeedforward.1} parent=71 // pred_fallthru
          _
      $region72: #{ffeedforward.1} parent=5 // pred_fallthru
        _
    $region6: #{ffeedforward.1} parent=1 // loop_footer
      %s23 = sadd.s32 1, %s19
    $region7: #{ffeedforward.1} parent=1 // loop_footer_branch
      %18 = sbr.rel target = $region3
    $region8: #{ffeedforward.1} parent=1 // loop_exit
      _
    %792 = vsyncpa [#allocation5], 1
    %s793 = scalar_lea.sflag [#allocation5], 1
    %794 = vsyncpa %s793, 1
    %795 = vsyncpa [#allocation7], 1
    %s796 = scalar_lea.sflag [#allocation7], 1
    %797 = vsyncpa %s796, 1

</llo_original>
